<compile_context>
chip_gen: v7x
topology: tpu7x:2x2x1
jax: 0.10.0
libtpu: 0.0.40
codegen_flags: <defaults>
</compile_context>

<pallas_src>
import functools

import jax
import jax.numpy as jnp
from jax.experimental import pallas as pl
from jax.experimental.pallas import tpu as pltpu

FILTER_SIZES = (2, 3, 5)
MAX_FS = max(FILTER_SIZES)

# Per-grid-step VMEM budget used to size the batch tile (leaves headroom under
# v7x's 64 MiB per-TC VMEM; v5e/v6e have 128 MiB so this is conservative there).
VMEM_TILE_BUDGET = 24 * 1024 * 1024


def _round_up(x, m):
    return ((x + m - 1) // m) * m


def cnn_sa_kernel(emb_ref, wconv_ref, bias_mask_ref, wout_ref, bout_ref, out_ref):
    """One batch tile of the full forward pass.

    emb_ref       : (TB, L, K_pad)       bf16, im2col-unfolded embeddings
    wconv_ref     : (K_pad, F3_pad)      bf16, im2col-packed conv weights
    bias_mask_ref : (L, F3_pad)          f32, conv bias where the window is
                                         valid, -1e30 where it runs off the seq
    wout_ref      : (F3_pad, C_pad)      bf16, fused fc @ output weights
    bout_ref      : (1, C_pad)           f32, fused bias
    out_ref       : (TB, C_pad)          f32 logits (lane-dense, zero-padded)
    """
    # Conv2d(1, F, (fs, E)) for all filter widths at once: a single MXU matmul
    # over the unfolded (window x embedding) contraction axis.
    dn = (((2,), (0,)), ((), ()))
    acc = jax.lax.dot_general(emb_ref[...], wconv_ref[...], dn,
                              preferred_element_type=jnp.float32)   # (TB, L, F3_pad)

    # bias_mask folds the conv bias (constant over time, commutes with the max)
    # and -inf at positions whose window would run past the sequence.
    pooled = jnp.max(acc + bias_mask_ref[...][None, :, :], axis=1)   # (TB, F3_pad)
    feat = jnp.clip(pooled, 0.0, 6.0)                                # relu6

    # fc -> dropout(identity) -> output, fused offline into a single matmul.
    logits = jnp.dot(feat.astype(wout_ref.dtype), wout_ref[...],
                     preferred_element_type=jnp.float32) + bout_ref[...]
    out_ref[...] = logits.astype(out_ref.dtype)


def pack_params(params, seq_len):
    """One-time (model-load-time) repack of the PyTorch-style parameters."""
    assert seq_len >= MAX_FS, "sequence must be at least as long as the largest filter"

    emb_table = params["embedding"]
    E = emb_table.shape[1]
    F = params[f"w{FILTER_SIZES[0]}"].shape[0]
    F3 = len(FILTER_SIZES) * F
    C = params["out_b"].shape[-1]
    K = MAX_FS * E
    k_pad = _round_up(K, 128)
    f3_pad = _round_up(F3, 128)
    c_pad = _round_up(C, 128)

    # im2col conv weights: wconv[i*E + e, j*F + f] = w_fs[f, i, e] for i < fs,
    # zero otherwise (and zero in the K / 3F padding).
    wconv = jnp.zeros((MAX_FS, E, F3), jnp.float32)
    for j, fs in enumerate(FILTER_SIZES):
        w = params[f"w{fs}"].reshape(F, fs, E)                       # (F, fs, E)
        wconv = wconv.at[:fs, :, j * F:(j + 1) * F].set(jnp.transpose(w, (1, 2, 0)))
    wconv = jnp.pad(wconv.reshape(K, F3), ((0, k_pad - K), (0, f3_pad - F3)))

    # Conv bias at valid positions / -1e30 where the window leaves the sequence;
    # lane-padding columns stay 0 (their fused-fc rows are zero anyway).
    bias_mask = jnp.zeros((seq_len, f3_pad), jnp.float32)
    t = jnp.arange(seq_len, dtype=jnp.int32)[:, None]
    for j, fs in enumerate(FILTER_SIZES):
        col = jnp.where(t < seq_len - fs + 1, params[f"b{fs}"].reshape(1, F), -1e30)
        bias_mask = bias_mask.at[:, j * F:(j + 1) * F].set(col)

    # No nonlinearity between fc and the output layer (only dropout = identity
    # at eval) -> fuse the two linears offline; pad to lane-dense shapes.
    w_fused = params["fc_w"] @ params["out_w"]                       # (3F, C)
    b_fused = params["fc_b"] @ params["out_w"] + params["out_b"]     # (1, C)
    w_fused = jnp.pad(w_fused, ((0, f3_pad - F3), (0, c_pad - C)))
    b_fused = jnp.pad(b_fused, ((0, 0), (0, c_pad - C)))

    return {
        "embedding": emb_table.astype(jnp.bfloat16),   # bf16 halves gather bytes
        "wconv": wconv.astype(jnp.bfloat16),
        "bias_mask": bias_mask.astype(jnp.float32),
        "w_out": w_fused.astype(jnp.bfloat16),
        "b_out": b_fused.astype(jnp.float32),
    }


def _const_spec(x):
    zeros = (0,) * x.ndim
    return pl.BlockSpec(x.shape, lambda b, z=zeros: z)


def cnn_forward(token_ids, packed, *, num_classes, block_batch=512):
    emb_table = packed["embedding"]
    wconv = packed["wconv"]
    bias_mask = packed["bias_mask"]
    w_out = packed["w_out"]
    b_out = packed["b_out"]

    E = emb_table.shape[1]
    k_pad, f3_pad = wconv.shape
    c_pad = w_out.shape[1]
    B, L = token_ids.shape
    assert L == bias_mask.shape[0], "pack_params(seq_len) must match token_ids seq length"
    K = MAX_FS * E

    # --- Batch tile: large enough to amortize the ~0.35us/step overhead and
    # keep the MXU fed, sized against a VMEM budget (v7x-safe), rounded to the
    # 8-sublane granule, and capped so the grid has >= 2 steps for megacore.
    per_row = 2 * L * k_pad * 2 + L * f3_pad * 4 + 2 * c_pad * 4
    tb = min(block_batch, max(8, VMEM_TILE_BUDGET // per_row))
    tb = max(8, (tb // 8) * 8)
    tb = min(tb, max(8, _round_up(pl.cdiv(B, 2), 8)))
    b_pad = _round_up(B, tb)
    if b_pad // tb < 2:
        b_pad = 2 * tb            # guarantee >= 2 grid steps (both TCs on v7x)
    grid = (b_pad // tb,)

    # Embedding lookup (padding_idx row is zero; batch-pad rows are discarded
    # after the kernel); dropout is identity at eval.
    ids = jnp.pad(token_ids, ((0, b_pad - B), (0, 0)))
    emb = jnp.take(emb_table, ids, axis=0)                           # (b_pad, L, E) bf16
    # im2col along the sequence so the conv is a single dense matmul in-kernel.
    emb_p = jnp.pad(emb, ((0, 0), (0, MAX_FS - 1), (0, 0)))
    unfold = jnp.concatenate([emb_p[:, i:i + L, :] for i in range(MAX_FS)], axis=-1)
    unfold = jnp.pad(unfold, ((0, 0), (0, 0), (0, k_pad - K)))       # (b_pad, L, k_pad)

    # Explicit scoped-VMEM limit: double-buffered emb + out tiles, the f32 conv
    # accumulator, double-buffered resident weights, plus slack.
    vmem_est = (2 * tb * L * k_pad * 2 + tb * L * f3_pad * 4 + 2 * tb * c_pad * 4
                + 2 * (k_pad * f3_pad * 2 + L * f3_pad * 4 + f3_pad * c_pad * 2 + c_pad * 4)
                + (4 << 20))
    vmem_limit = int(min(64 << 20, max(32 << 20, vmem_est)))

    out = pl.pallas_call(
        cnn_sa_kernel,
        out_shape=jax.ShapeDtypeStruct((b_pad, c_pad), jnp.float32),
        grid=grid,
        in_specs=[pl.BlockSpec((tb, L, k_pad), lambda b: (b, 0, 0)),
                  _const_spec(wconv),
                  _const_spec(bias_mask),
                  _const_spec(w_out),
                  _const_spec(b_out)],
        out_specs=pl.BlockSpec((tb, c_pad), lambda b: (b, 0)),
        compiler_params=pltpu.CompilerParams(
            dimension_semantics=("parallel",),
            vmem_limit_bytes=vmem_limit),
    )(unfold, wconv, bias_mask, w_out, b_out)

    return out[:B, :num_classes]


def init_params(key, vocab_size, embedding_size, hidden_size, pad_idx,
                n_filters, num_classes):
    keys = jax.random.split(key, 11)

    def uni(k, shape, fan_in):
        s = float(fan_in) ** -0.5
        return jax.random.uniform(k, shape, jnp.float32, -s, s)

    emb = jax.random.normal(keys[0], (vocab_size, embedding_size), jnp.float32)
    emb = emb.at[pad_idx].set(0.0)          # nn.Embedding padding_idx behaviour

    params = {"embedding": emb}
    for i, fs in enumerate(FILTER_SIZES):
        fan_in = fs * embedding_size        # in_channels=1 * fs * E
        params[f"w{fs}"] = uni(keys[1 + 2 * i], (n_filters, fs * embedding_size), fan_in)
        params[f"b{fs}"] = uni(keys[2 + 2 * i], (1, n_filters), fan_in)

    fc_in = len(FILTER_SIZES) * n_filters
    params["fc_w"] = uni(keys[7], (fc_in, hidden_size), fc_in)
    params["fc_b"] = uni(keys[8], (1, hidden_size), fc_in)
    params["out_w"] = uni(keys[9], (hidden_size, num_classes), hidden_size)
    params["out_b"] = uni(keys[10], (1, num_classes), hidden_size)
    return params


if __name__ == "__main__":
    VOCAB, EMB, HIDDEN, PAD = 50, 32, 32, 0
    N_FILTERS, NUM_CLASSES = 8, 2
    B, L = 2, 16

    key = jax.random.PRNGKey(0)
    k_params, k_ids = jax.random.split(key)
    params = init_params(k_params, VOCAB, EMB, HIDDEN, PAD,
                         N_FILTERS, NUM_CLASSES)
    token_ids = jax.random.randint(k_ids, (B, L), 0, VOCAB, dtype=jnp.int32)

    # One-time model-load-time repack, hoisted out of the per-call hot path.
    packed = pack_params(params, seq_len=L)
    fwd = jax.jit(functools.partial(cnn_forward, num_classes=NUM_CLASSES))

    logits = fwd(token_ids, packed)
    jax.block_until_ready(logits)
    assert logits.shape == (B, NUM_CLASSES)
    assert logits.dtype == jnp.float32
    assert bool(jnp.all(jnp.isfinite(logits)))
    print("KERNEL_OK")
</pallas_src>

<mosaic_0001>
module attributes {stable_mosaic.version = 11 : i64} {
  func.func @cnn_sa_kernel(%arg0: i32, %arg1: memref<8x16x256xbf16, #tpu.memory_space<vmem>>, %arg2: memref<256x128xbf16, #tpu.memory_space<vmem>>, %arg3: memref<16x128xf32, #tpu.memory_space<vmem>>, %arg4: memref<128x128xbf16, #tpu.memory_space<vmem>>, %arg5: memref<1x128xf32, #tpu.memory_space<vmem>>, %arg6: memref<8x128xf32, #tpu.memory_space<vmem>>) attributes {dimension_semantics = [#tpu.dimension_semantics<parallel>], iteration_bounds = array<i64: 2>, scalar_prefetch = 0 : i64, scratch_operands = 0 : i64, tpu.core_type = #tpu.core_type<tc>, window_params = [{transform_indices = @transform_0, window_bounds = array<i64: 8, 16, 256>}, {pipeline_mode = #tpu.pipeline_mode<synchronous>, transform_indices = @transform_1, window_bounds = array<i64: 256, 128>}, {pipeline_mode = #tpu.pipeline_mode<synchronous>, transform_indices = @transform_2, window_bounds = array<i64: 16, 128>}, {pipeline_mode = #tpu.pipeline_mode<synchronous>, transform_indices = @transform_3, window_bounds = array<i64: 128, 128>}, {pipeline_mode = #tpu.pipeline_mode<synchronous>, transform_indices = @transform_4, window_bounds = array<i64: 1, 128>}, {transform_indices = @transform_5, window_bounds = array<i64: 8, 128>}]} {
    %c0 = arith.constant 0 : index
    %c0_0 = arith.constant 0 : index
    %c0_1 = arith.constant 0 : index
    %0 = vector.load %arg1[%c0, %c0_0, %c0_1] : memref<8x16x256xbf16, #tpu.memory_space<vmem>>, vector<8x16x256xbf16>
    %c0_2 = arith.constant 0 : index
    %c0_3 = arith.constant 0 : index
    %1 = vector.load %arg2[%c0_2, %c0_3] : memref<256x128xbf16, #tpu.memory_space<vmem>>, vector<256x128xbf16>
    %cst = arith.constant dense<0.000000e+00> : vector<8x16x128xf32>
    %2 = tpu.matmul %0, %1, %cst {dimension_numbers = #tpu.dot_dimension_numbers<[2], [0], [0, 1], [1], [0, 0, 0, 1, 1, 1], [], []>} : vector<8x16x256xbf16>, vector<256x128xbf16>, vector<8x16x128xf32> -> vector<8x16x128xf32>
    %c0_4 = arith.constant 0 : index
    %c0_5 = arith.constant 0 : index
    %3 = vector.load %arg3[%c0_4, %c0_5] : memref<16x128xf32, #tpu.memory_space<vmem>>, vector<16x128xf32>
    %4 = vector.shape_cast %3 : vector<16x128xf32> to vector<1x16x128xf32>
    %5 = vector.broadcast %4 : vector<1x16x128xf32> to vector<8x16x128xf32>
    %6 = arith.addf %2, %5 : vector<8x16x128xf32>
    %cst_6 = arith.constant dense<0xFF800000> : vector<8x128xf32>
    %7 = vector.multi_reduction <maximumf>, %6, %cst_6 [1] : vector<8x16x128xf32> to vector<8x128xf32>
    %cst_7 = arith.constant 0.000000e+00 : f32
    %cst_8 = arith.constant 6.000000e+00 : f32
    %8 = vector.broadcast %cst_7 : f32 to vector<8x128xf32>
    %9 = arith.maximumf %8, %7 : vector<8x128xf32>
    %10 = vector.broadcast %cst_8 : f32 to vector<8x128xf32>
    %11 = arith.minimumf %10, %9 : vector<8x128xf32>
    %12 = arith.truncf %11 : vector<8x128xf32> to vector<8x128xbf16>
    %c0_9 = arith.constant 0 : index
    %c0_10 = arith.constant 0 : index
    %13 = vector.load %arg4[%c0_9, %c0_10] : memref<128x128xbf16, #tpu.memory_space<vmem>>, vector<128x128xbf16>
    %cst_11 = arith.constant dense<0.000000e+00> : vector<8x128xf32>
    %14 = tpu.matmul %12, %13, %cst_11 {dimension_numbers = #tpu.dot_dimension_numbers<[1], [0], [0], [1], [0, 0, 1, 1], [], []>} : vector<8x128xbf16>, vector<128x128xbf16>, vector<8x128xf32> -> vector<8x128xf32>
    %c0_12 = arith.constant 0 : index
    %c0_13 = arith.constant 0 : index
    %15 = vector.load %arg5[%c0_12, %c0_13] : memref<1x128xf32, #tpu.memory_space<vmem>>, vector<1x128xf32>
    %16 = vector.broadcast %15 : vector<1x128xf32> to vector<8x128xf32>
    %17 = arith.addf %14, %16 : vector<8x128xf32>
    %c0_14 = arith.constant 0 : index
    %c0_15 = arith.constant 0 : index
    %18 = vector.load %arg6[%c0_14, %c0_15] : memref<8x128xf32, #tpu.memory_space<vmem>>, vector<8x128xf32>
    tpu.vector_store %arg6[%c0_14, %c0_15], %17 {strides = array<i32>} : memref<8x128xf32, #tpu.memory_space<vmem>>, vector<8x128xf32>,
    return
  }
  func.func @transform_0(%arg0: i32) -> (i32, i32, i32) {
    %c0_i32 = arith.constant 0 : i32
    %c0_i32_0 = arith.constant 0 : i32
    %c0_i32_1 = arith.constant 0 : i32
    return %arg0, %c0_i32, %c0_i32_0 : i32, i32, i32
  }
  func.func @transform_1(%arg0: i32) -> (i32, i32) {
    %c0_i32 = arith.constant 0 : i32
    %c0_i32_0 = arith.constant 0 : i32
    %c0_i32_1 = arith.constant 0 : i32
    return %c0_i32, %c0_i32_0 : i32, i32
  }
  func.func @transform_2(%arg0: i32) -> (i32, i32) {
    %c0_i32 = arith.constant 0 : i32
    %c0_i32_0 = arith.constant 0 : i32
    %c0_i32_1 = arith.constant 0 : i32
    return %c0_i32, %c0_i32_0 : i32, i32
  }
  func.func @transform_3(%arg0: i32) -> (i32, i32) {
    %c0_i32 = arith.constant 0 : i32
    %c0_i32_0 = arith.constant 0 : i32
    %c0_i32_1 = arith.constant 0 : i32
    return %c0_i32, %c0_i32_0 : i32, i32
  }
  func.func @transform_4(%arg0: i32) -> (i32, i32) {
    %c0_i32 = arith.constant 0 : i32
    %c0_i32_0 = arith.constant 0 : i32
    %c0_i32_1 = arith.constant 0 : i32
    return %c0_i32, %c0_i32_0 : i32, i32
  }
  func.func @transform_5(%arg0: i32) -> (i32, i32) {
    %c0_i32 = arith.constant 0 : i32
    %c0_i32_0 = arith.constant 0 : i32
    return %arg0, %c0_i32 : i32, i32
  }
}

</mosaic_0001>

<llo_original>
// kernel: cnn_forward.1
$region0: #{cnn_forward.1}
  #allocation0 [shape = 'u32[]', space=smem, size = 0x4, offset = 0x4, fixed_abs, tag = 'smem constant byte address 0x4 - core index']
  #allocation1 [shape = 'u32[144,128]{1,0:T(1,128)}', space=vmem, size = 0x12000, scoped, tag = 'internal scratch']
  %s0 = inlined_call_operand.vmem [shape: bf16[16,16,256], index: 0, kind: input, shape index: {}]
  %s1 = inlined_call_operand.vmem [shape: bf16[256,128], index: 1, kind: input, shape index: {}]
  %s2 = inlined_call_operand.vmem [shape: f32[16,128], index: 2, kind: input, shape index: {}]
  %s3 = inlined_call_operand.vmem [shape: bf16[128,128], index: 3, kind: input, shape index: {}]
  %s4 = inlined_call_operand.vmem [shape: f32[1,128], index: 4, kind: input, shape index: {}]
  %s5 = inlined_call_operand.vmem [shape: f32[16,128], index: 5, kind: output, shape index: {}]
  %s6 = sld [smem:[#allocation0]]
  $region53: #{cnn_forward.1} parent=0
    _
  %s8 = ssub.s32 1, %s6
  %s9 = scalar_select 0, %s8, %s6
  loop: start=0, step=1, limit=4
  $region2: #{cnn_forward.1} parent=0 // loop_pre_header
    _
  $region3: #{cnn_forward.1} parent=0 // loop_header
    %s11 = sphi 0, %s15
    %p12 = scmp.ge.s32.totalorder %s11, 4
    %s21 = sphi 0, %s23
    %s24 = sphi 0, %s21
    %s25 = sphi 0, %s24
    %s41 = sphi 0, %s25
    %s45 = sphi 0, %s45
    %s47 = sphi 0, %s45
    %s48 = sphi 0, %s47
    %s62 = sphi 0, %s48
    %s66 = sphi 0, %s66
    %s68 = sphi 0, %s66
    %s69 = sphi 0, %s68
    %s83 = sphi 0, %s69
    %s87 = sphi 0, %s87
    %s89 = sphi 0, %s87
    %s90 = sphi 0, %s89
    %s104 = sphi 0, %s90
    %s108 = sphi 0, %s108
    %s110 = sphi 0, %s108
    %s111 = sphi 0, %s110
    %s125 = sphi 0, %s111
    %s131 = sphi 0, %s133
    %s134 = sphi 0, %s131
    %s135 = sphi 0, %s134
    %s151 = sphi 0, %s135
  $region4: #{cnn_forward.1} parent=0 // loop_header_branch
    %14 = sbr.rel (%p12) target = $region8
  $region5: #{cnn_forward.1} parent=0 // loop_body
    %s16 = ssub.s32 %s11, 1
    %s17 = ssub.s32 %s11, 2
    %s18 = sadd.s32 %s11, 1
    %s19 = ssub.s32 %s11, %s18
    %p20 = scmp.eq.s32.totalorder %s19, 0
    %s22 = sadd.s32 %s21, 1
    %s23 = scalar_select %p20, %s21, %s22
    %p26 = pneg %p20
    %p27 = scmp.eq.s32.totalorder %s11, 1
    %p28 = por %p26, %p27
    %p29 = scmp.ne.s32.totalorder %s21, %s24
    %p30 = scmp.eq.s32.totalorder %s11, 0
    %p31 = por %p29, %p30
    %p32 = scmp.ne.s32.totalorder %s21, %s24
    %p33 = scmp.eq.s32.totalorder %s16, 1
    %p34 = por %p32, %p33
    %p35 = scmp.ne.s32.totalorder %s24, %s25
    %p36 = scmp.eq.s32.totalorder %s16, 0
    %p37 = por %p35, %p36
    %p38 = scmp.ne.s32.totalorder %s24, %s25
    %p39 = scmp.eq.s32.totalorder %s17, 1
    %p40 = por %p38, %p39
    %p42 = scmp.ne.s32.totalorder %s25, %s41
    %p43 = scmp.eq.s32.totalorder %s17, 0
    %p44 = por %p42, %p43
    %s46 = sadd.s32 %s45, 1
    %p49 = scmp.eq.s32.totalorder %s11, 1
    %p50 = scmp.ne.s32.totalorder %s45, %s47
    %p51 = scmp.eq.s32.totalorder %s11, 0
    %p52 = por %p50, %p51
    %p53 = scmp.ne.s32.totalorder %s45, %s47
    %p54 = scmp.eq.s32.totalorder %s16, 1
    %p55 = por %p53, %p54
    %p56 = scmp.ne.s32.totalorder %s47, %s48
    %p57 = scmp.eq.s32.totalorder %s16, 0
    %p58 = por %p56, %p57
    %p59 = scmp.ne.s32.totalorder %s47, %s48
    %p60 = scmp.eq.s32.totalorder %s17, 1
    %p61 = por %p59, %p60
    %p63 = scmp.ne.s32.totalorder %s48, %s62
    %p64 = scmp.eq.s32.totalorder %s17, 0
    %p65 = por %p63, %p64
    %s67 = sadd.s32 %s66, 1
    %p70 = scmp.eq.s32.totalorder %s11, 1
    %p71 = scmp.ne.s32.totalorder %s66, %s68
    %p72 = scmp.eq.s32.totalorder %s11, 0
    %p73 = por %p71, %p72
    %p74 = scmp.ne.s32.totalorder %s66, %s68
    %p75 = scmp.eq.s32.totalorder %s16, 1
    %p76 = por %p74, %p75
    %p77 = scmp.ne.s32.totalorder %s68, %s69
    %p78 = scmp.eq.s32.totalorder %s16, 0
    %p79 = por %p77, %p78
    %p80 = scmp.ne.s32.totalorder %s68, %s69
    %p81 = scmp.eq.s32.totalorder %s17, 1
    %p82 = por %p80, %p81
    %p84 = scmp.ne.s32.totalorder %s69, %s83
    %p85 = scmp.eq.s32.totalorder %s17, 0
    %p86 = por %p84, %p85
    %s88 = sadd.s32 %s87, 1
    %p91 = scmp.eq.s32.totalorder %s11, 1
    %p92 = scmp.ne.s32.totalorder %s87, %s89
    %p93 = scmp.eq.s32.totalorder %s11, 0
    %p94 = por %p92, %p93
    %p95 = scmp.ne.s32.totalorder %s87, %s89
    %p96 = scmp.eq.s32.totalorder %s16, 1
    %p97 = por %p95, %p96
    %p98 = scmp.ne.s32.totalorder %s89, %s90
    %p99 = scmp.eq.s32.totalorder %s16, 0
    %p100 = por %p98, %p99
    %p101 = scmp.ne.s32.totalorder %s89, %s90
    %p102 = scmp.eq.s32.totalorder %s17, 1
    %p103 = por %p101, %p102
    %p105 = scmp.ne.s32.totalorder %s90, %s104
    %p106 = scmp.eq.s32.totalorder %s17, 0
    %p107 = por %p105, %p106
    %s109 = sadd.s32 %s108, 1
    %p112 = scmp.eq.s32.totalorder %s11, 1
    %p113 = scmp.ne.s32.totalorder %s108, %s110
    %p114 = scmp.eq.s32.totalorder %s11, 0
    %p115 = por %p113, %p114
    %p116 = scmp.ne.s32.totalorder %s108, %s110
    %p117 = scmp.eq.s32.totalorder %s16, 1
    %p118 = por %p116, %p117
    %p119 = scmp.ne.s32.totalorder %s110, %s111
    %p120 = scmp.eq.s32.totalorder %s16, 0
    %p121 = por %p119, %p120
    %p122 = scmp.ne.s32.totalorder %s110, %s111
    %p123 = scmp.eq.s32.totalorder %s17, 1
    %p124 = por %p122, %p123
    %p126 = scmp.ne.s32.totalorder %s111, %s125
    %p127 = scmp.eq.s32.totalorder %s17, 0
    %p128 = por %p126, %p127
    %s129 = ssub.s32 %s11, %s18
    %p130 = scmp.eq.s32.totalorder %s129, 0
    %s132 = sadd.s32 %s131, 1
    %s133 = scalar_select %p130, %s131, %s132
    %p136 = pneg %p130
    %p137 = scmp.eq.s32.totalorder %s11, 1
    %p138 = por %p136, %p137
    %p139 = scmp.ne.s32.totalorder %s131, %s134
    %p140 = scmp.eq.s32.totalorder %s11, 0
    %p141 = por %p139, %p140
    %p142 = scmp.ne.s32.totalorder %s131, %s134
    %p143 = scmp.eq.s32.totalorder %s16, 1
    %p144 = por %p142, %p143
    %p145 = scmp.ne.s32.totalorder %s134, %s135
    %p146 = scmp.eq.s32.totalorder %s16, 0
    %p147 = por %p145, %p146
    %p148 = scmp.ne.s32.totalorder %s134, %s135
    %p149 = scmp.eq.s32.totalorder %s17, 1
    %p150 = por %p148, %p149
    %p152 = scmp.ne.s32.totalorder %s135, %s151
    %p153 = scmp.eq.s32.totalorder %s17, 0
    %p154 = por %p152, %p153
    %p155 = scmp.le.s32.totalorder 1, %s11
    %p156 = scmp.lt.s32.totalorder %s11, 3
    %p157 = pnand %p155, %p156
    %p158 = pneg %p157
    // Predicated region
    $region9: #{cnn_forward.1} parent=5 // pred_check
      _
    $region10: #{cnn_forward.1} parent=5 // pred_check_branch
      %160 = sbr.rel (%p157) target = $region12
    $region11: #{cnn_forward.1} parent=5 // pred_region
      %s161 = ssub.s32 %s11, 1
      // Predicated region
      $region13: #{cnn_forward.1} parent=11 // pred_check
        %p162 = pneg %p58
      $region14: #{cnn_forward.1} parent=11 // pred_check_branch
        %164 = sbr.rel (%p162) target = $region16
      $region15: #{cnn_forward.1} parent=11 // pred_region
        _
      $region16: #{cnn_forward.1} parent=11 // pred_fallthru
        _
      // Predicated region
      $region17: #{cnn_forward.1} parent=11 // pred_check
        %p165 = pneg %p79
      $region18: #{cnn_forward.1} parent=11 // pred_check_branch
        %167 = sbr.rel (%p165) target = $region20
      $region19: #{cnn_forward.1} parent=11 // pred_region
        _
      $region20: #{cnn_forward.1} parent=11 // pred_fallthru
        _
      // Predicated region
      $region21: #{cnn_forward.1} parent=11 // pred_check
        %p168 = pneg %p100
      $region22: #{cnn_forward.1} parent=11 // pred_check_branch
        %170 = sbr.rel (%p168) target = $region24
      $region23: #{cnn_forward.1} parent=11 // pred_region
        _
      $region24: #{cnn_forward.1} parent=11 // pred_fallthru
        _
      // Predicated region
      $region25: #{cnn_forward.1} parent=11 // pred_check
        %p171 = pneg %p121
      $region26: #{cnn_forward.1} parent=11 // pred_check_branch
        %173 = sbr.rel (%p171) target = $region28
      $region27: #{cnn_forward.1} parent=11 // pred_region
        _
      $region28: #{cnn_forward.1} parent=11 // pred_fallthru
        _
    $region12: #{cnn_forward.1} parent=5 // pred_fallthru
      _
    %p174 = scmp.lt.s32.totalorder %s11, 2
    // Predicated region
    $region29: #{cnn_forward.1} parent=5 // pred_check
      %p175 = pneg %p174
    $region30: #{cnn_forward.1} parent=5 // pred_check_branch
      %177 = sbr.rel (%p175) target = $region32
    $region31: #{cnn_forward.1} parent=5 // pred_region
      // Predicated region
      $region33: #{cnn_forward.1} parent=31 // pred_check
        %p178 = pneg %p31
      $region34: #{cnn_forward.1} parent=31 // pred_check_branch
        %180 = sbr.rel (%p178) target = $region36
      $region35: #{cnn_forward.1} parent=31 // pred_region
        %s181 = smul.u32 8, %s11
        %p182 = scmp.lt.s32.totalorder %s181, 15
        %s183 = scalar_select %p182, %s181, 15
        %s184 = smul.addr %s183, 4
        %s185 = smul.addr %s184, 4
        %s186 = scalar_lea.vmem %s0, %s185
        %s187 = smul.u32 8, %s11
      $region36: #{cnn_forward.1} parent=31 // pred_fallthru
        _
    $region32: #{cnn_forward.1} parent=5 // pred_fallthru
      _
    %p188 = scmp.le.s32.totalorder 1, %s11
    %p189 = scmp.lt.s32.totalorder %s11, 3
    %p190 = pnand %p188, %p189
    %p191 = pneg %p190
    // Predicated region
    $region37: #{cnn_forward.1} parent=5 // pred_check
      _
    $region38: #{cnn_forward.1} parent=5 // pred_check_branch
      %193 = sbr.rel (%p190) target = $region40
    $region39: #{cnn_forward.1} parent=5 // pred_region
      %s194 = ssub.s32 %s11, 1
      %s195 = smul.u32 8, %s16
      %p196 = scmp.lt.s32.totalorder %s195, 15
      %s197 = scalar_select %p196, %s195, 15
      %s198 = smul.addr %s197, 4
      %s199 = smul.addr %s198, 4
      %s200 = scalar_lea.vmem %s0, %s199
      %p201 = pneg %p37
      %p202 = pneg %p34
      %p203 = pneg %p58
      %p204 = pneg %p55
      %p205 = pneg %p79
      %p206 = pneg %p76
      %p207 = pneg %p100
      %p208 = pneg %p97
      %p209 = pneg %p121
      %p210 = pneg %p118
      %p211 = pneg %p147
      %p212 = pneg %p144
      %p213 = scmp.lt.s32.totalorder %s16, 1
      %s214 = scalar_select %p213, %s16, 1
      %s215 = smul.addr %s214, 8
      %s216 = scalar_lea.vmem %s5, %s215
      %s217 = smul.u32 8, %s16
      %p218 = scmp.lt.s32.totalorder %s217, 15
      %s219 = scalar_select %p218, %s217, 15
      %s220 = smul.addr %s219, 4
      %s221 = smul.addr %s220, 4
      %s222 = scalar_lea.vmem %s0, %s221
      %s223 = smul.u32 8, %s16
      %p224 = scmp.lt.s32.totalorder %s16, 1
      %s225 = scalar_select %p224, %s16, 1
      %s226 = smul.addr %s225, 8
      %s227 = scalar_lea.vmem %s5, %s226
      %v229 = vld [vmem:[%s222] sm:$0xff]
      %v230 = vld [vmem:[%s222 + $0x8] sm:$0xff]
      %v231 = vld [vmem:[%s222 + $0x10] sm:$0xff]
      %v232 = vld [vmem:[%s222 + $0x18] sm:$0xff]
      %v233 = vld [vmem:[%s222 + $0x20] sm:$0xff]
      %v234 = vld [vmem:[%s222 + $0x28] sm:$0xff]
      %v235 = vld [vmem:[%s222 + $0x30] sm:$0xff]
      %v236 = vld [vmem:[%s222 + $0x38] sm:$0xff]
      %v237 = vld [vmem:[%s222 + $0x40] sm:$0xff]
      %v238 = vld [vmem:[%s222 + $0x48] sm:$0xff]
      %v239 = vld [vmem:[%s222 + $0x50] sm:$0xff]
      %v240 = vld [vmem:[%s222 + $0x58] sm:$0xff]
      %v241 = vld [vmem:[%s222 + $0x60] sm:$0xff]
      %v242 = vld [vmem:[%s222 + $0x68] sm:$0xff]
      %v243 = vld [vmem:[%s222 + $0x70] sm:$0xff]
      %v244 = vld [vmem:[%s222 + $0x78] sm:$0xff]
      %v245 = vld [vmem:[%s1] sm:$0xf]
      %v246 = vld [vmem:[%s1 + $0x4] sm:$0xf]
      %v247 = vld [vmem:[%s1 + $0x8] sm:$0xf]
      %v248 = vld [vmem:[%s1 + $0xc] sm:$0xf]
      %v249 = vld [vmem:[%s1 + $0x10] sm:$0xf]
      %v250 = vld [vmem:[%s1 + $0x14] sm:$0xf]
      %v251 = vld [vmem:[%s1 + $0x18] sm:$0xf]
      %v252 = vld [vmem:[%s1 + $0x1c] sm:$0xf]
      %v253 = vld [vmem:[%s1 + $0x20] sm:$0xf]
      %v254 = vld [vmem:[%s1 + $0x24] sm:$0xf]
      %v255 = vld [vmem:[%s1 + $0x28] sm:$0xf]
      %v256 = vld [vmem:[%s1 + $0x2c] sm:$0xf]
      %v257 = vld [vmem:[%s1 + $0x30] sm:$0xf]
      %v258 = vld [vmem:[%s1 + $0x34] sm:$0xf]
      %v259 = vld [vmem:[%s1 + $0x38] sm:$0xf]
      %v260 = vld [vmem:[%s1 + $0x3c] sm:$0xf]
      %v261 = vld [vmem:[%s1 + $0x40] sm:$0xf]
      %v262 = vld [vmem:[%s1 + $0x44] sm:$0xf]
      %v263 = vld [vmem:[%s1 + $0x48] sm:$0xf]
      %v264 = vld [vmem:[%s1 + $0x4c] sm:$0xf]
      %v265 = vld [vmem:[%s1 + $0x50] sm:$0xf]
      %v266 = vld [vmem:[%s1 + $0x54] sm:$0xf]
      %v267 = vld [vmem:[%s1 + $0x58] sm:$0xf]
      %v268 = vld [vmem:[%s1 + $0x5c] sm:$0xf]
      %v269 = vld [vmem:[%s1 + $0x60] sm:$0xf]
      %v270 = vld [vmem:[%s1 + $0x64] sm:$0xf]
      %v271 = vld [vmem:[%s1 + $0x68] sm:$0xf]
      %v272 = vld [vmem:[%s1 + $0x6c] sm:$0xf]
      %v273 = vld [vmem:[%s1 + $0x70] sm:$0xf]
      %v274 = vld [vmem:[%s1 + $0x74] sm:$0xf]
      %v275 = vld [vmem:[%s1 + $0x78] sm:$0xf]
      %v276 = vld [vmem:[%s1 + $0x7c] sm:$0xf]
      %v277 = vld [vmem:[%s2] sm:$0xff]
      %v278 = vld [vmem:[%s2 + $0x8] sm:$0xff]
      %v295 = vunpack.c.l.b16 %v229
      %v296 = vunpack.c.h.b16 %v229
      %v297 = vunpack.c.l.b16 %v230
      %v298 = vunpack.c.h.b16 %v230
      %v299 = vunpack.c.l.b16 %v231
      %v300 = vunpack.c.h.b16 %v231
      %v301 = vunpack.c.l.b16 %v232
      %v302 = vunpack.c.h.b16 %v232
      %v303 = vunpack.c.l.b16 %v233
      %v304 = vunpack.c.h.b16 %v233
      %v305 = vunpack.c.l.b16 %v234
      %v306 = vunpack.c.h.b16 %v234
      %v307 = vunpack.c.l.b16 %v235
      %v308 = vunpack.c.h.b16 %v235
      %v309 = vunpack.c.l.b16 %v236
      %v310 = vunpack.c.h.b16 %v236
      %v311 = vunpack.c.l.b16 %v237
      %v312 = vunpack.c.h.b16 %v237
      %v313 = vunpack.c.l.b16 %v238
      %v314 = vunpack.c.h.b16 %v238
      %v315 = vunpack.c.l.b16 %v239
      %v316 = vunpack.c.h.b16 %v239
      %v317 = vunpack.c.l.b16 %v240
      %v318 = vunpack.c.h.b16 %v240
      %v319 = vunpack.c.l.b16 %v241
      %v320 = vunpack.c.h.b16 %v241
      %v321 = vunpack.c.l.b16 %v242
      %v322 = vunpack.c.h.b16 %v242
      %v323 = vunpack.c.l.b16 %v243
      %v324 = vunpack.c.h.b16 %v243
      %v325 = vunpack.c.l.b16 %v244
      %v326 = vunpack.c.h.b16 %v244
      %v327 = vpack.c.b16 %v297, %v295
      %v328 = vpack.c.b16 %v298, %v296
      %v329 = vpack.c.b16 %v301, %v299
      %v330 = vpack.c.b16 %v302, %v300
      %v331 = vpack.c.b16 %v305, %v303
      %v332 = vpack.c.b16 %v306, %v304
      %v333 = vpack.c.b16 %v309, %v307
      %v334 = vpack.c.b16 %v310, %v308
      %v335 = vpack.c.b16 %v313, %v311
      %v336 = vpack.c.b16 %v314, %v312
      %v337 = vpack.c.b16 %v317, %v315
      %v338 = vpack.c.b16 %v318, %v316
      %v339 = vpack.c.b16 %v321, %v319
      %v340 = vpack.c.b16 %v322, %v320
      %v341 = vpack.c.b16 %v325, %v323
      %v342 = vpack.c.b16 %v326, %v324
      %v391 = vunpack.c.l.b16 %v245
      %v392 = vunpack.c.l.b16 %v246
      %v393 = vunpack.c.l.b16 %v247
      %v394 = vunpack.c.l.b16 %v248
      %v395 = vunpack.c.l.b16 %v249
      %v396 = vunpack.c.l.b16 %v250
      %v397 = vunpack.c.l.b16 %v251
      %v398 = vunpack.c.l.b16 %v252
      %v399 = vunpack.c.l.b16 %v253
      %v400 = vunpack.c.l.b16 %v254
      %v401 = vunpack.c.l.b16 %v255
      %v402 = vunpack.c.l.b16 %v256
      %v403 = vunpack.c.l.b16 %v257
      %v404 = vunpack.c.l.b16 %v258
      %v405 = vunpack.c.l.b16 %v259
      %v406 = vunpack.c.l.b16 %v260
      %v407 = vunpack.c.l.b16 %v261
      %v408 = vunpack.c.l.b16 %v262
      %v409 = vunpack.c.l.b16 %v263
      %v410 = vunpack.c.l.b16 %v264
      %v411 = vunpack.c.l.b16 %v265
      %v412 = vunpack.c.l.b16 %v266
      %v413 = vunpack.c.l.b16 %v267
      %v414 = vunpack.c.l.b16 %v268
      %v415 = vunpack.c.l.b16 %v269
      %v416 = vunpack.c.l.b16 %v270
      %v417 = vunpack.c.l.b16 %v271
      %v418 = vunpack.c.l.b16 %v272
      %v419 = vunpack.c.l.b16 %v273
      %v420 = vunpack.c.l.b16 %v274
      %v421 = vunpack.c.l.b16 %v275
      %v422 = vunpack.c.l.b16 %v276
      %v423 = vpack.c.b16 %v392, %v391
      %v424 = vpack.c.b16 %v394, %v393
      %v425 = vpack.c.b16 %v396, %v395
      %v426 = vpack.c.b16 %v398, %v397
      %v427 = vpack.c.b16 %v400, %v399
      %v428 = vpack.c.b16 %v402, %v401
      %v429 = vpack.c.b16 %v404, %v403
      %v430 = vpack.c.b16 %v406, %v405
      %v431 = vpack.c.b16 %v408, %v407
      %v432 = vpack.c.b16 %v410, %v409
      %v433 = vpack.c.b16 %v412, %v411
      %v434 = vpack.c.b16 %v414, %v413
      %v435 = vpack.c.b16 %v416, %v415
      %v436 = vpack.c.b16 %v418, %v417
      %v437 = vpack.c.b16 %v420, %v419
      %v438 = vpack.c.b16 %v422, %v421
      %455 = vmatprep.subr.bf16.mxu0 0
      %456 = vmatpush1.bf16.msra.mxu0 %v423
      %457 = vmatprep.subr.bf16.mxu0 0
      %458 = vmatpush1.bf16.msra.mxu0 %v424
      %459 = vmatprep.subr.bf16.mxu0 0
      %460 = vmatpush1.bf16.msra.mxu0 %v425
      %461 = vmatprep.subr.bf16.mxu0 0
      %462 = vmatpush1.bf16.msra.mxu0 %v426
      %463 = vmatprep.subr.bf16.mxu0 0
      %464 = vmatpush1.bf16.msra.mxu0 %v427
      %465 = vmatprep.subr.bf16.mxu0 0
      %466 = vmatpush1.bf16.msra.mxu0 %v428
      %467 = vmatprep.subr.bf16.mxu0 0
      %468 = vmatpush1.bf16.msra.mxu0 %v429
      %469 = vmatprep.subr.bf16.mxu0 0
      %470 = vmatpush1.bf16.msra.mxu0 %v430
      %471 = vmatprep.subr.bf16.mxu0 0
      %472 = vmatpush1.bf16.msra.mxu0 %v431
      %473 = vmatprep.subr.bf16.mxu0 0
      %474 = vmatpush1.bf16.msra.mxu0 %v432
      %475 = vmatprep.subr.bf16.mxu0 0
      %476 = vmatpush1.bf16.msra.mxu0 %v433
      %477 = vmatprep.subr.bf16.mxu0 0
      %478 = vmatpush1.bf16.msra.mxu0 %v434
      %479 = vmatprep.subr.bf16.mxu0 0
      %480 = vmatpush1.bf16.msra.mxu0 %v435
      %481 = vmatprep.subr.bf16.mxu0 0
      %482 = vmatpush1.bf16.msra.mxu0 %v436
      %483 = vmatprep.subr.bf16.mxu0 0
      %484 = vmatpush1.bf16.msra.mxu0 %v437
      %485 = vmatprep.subr.bf16.mxu0 0
      %486 = vmatpush1.bf16.msra.mxu0 %v438
      %487 = vmatprep.mubr.bf16.mxu0 %v328
      %488 = vmatmul.mubr.bf16.gmra.mrb[0].mxu0 %v327
      %v489 = vpop.f32.mrb[0].mxu0
      %v490 = vadd.f32 %v277, %v489
      %v491 = vpop.f32.mrb[0].mxu0
      %v492 = vpop.f32.mrb[0].mxu0
      %v493 = vadd.f32 %v278, %v492
      %v494 = vpop.f32.mrb[0].mxu0
      %495 = vmatprep.mubr.bf16.mxu0 %v330
      %496 = vmatmul.mubr.bf16.gmra.mrb[0].mxu0 %v329
      %v497 = vpop.f32.mrb[0].mxu0
      %v498 = vadd.f32 %v277, %v497
      %v499 = vpop.f32.mrb[0].mxu0
      %v500 = vpop.f32.mrb[0].mxu0
      %v501 = vadd.f32 %v278, %v500
      %v502 = vpop.f32.mrb[0].mxu0
      %503 = vmatprep.mubr.bf16.mxu0 %v332
      %504 = vmatmul.mubr.bf16.gmra.mrb[0].mxu0 %v331
      %v505 = vpop.f32.mrb[0].mxu0
      %v506 = vadd.f32 %v277, %v505
      %v507 = vpop.f32.mrb[0].mxu0
      %v508 = vpop.f32.mrb[0].mxu0
      %v509 = vadd.f32 %v278, %v508
      %v510 = vpop.f32.mrb[0].mxu0
      %511 = vmatprep.mubr.bf16.mxu0 %v334
      %512 = vmatmul.mubr.bf16.gmra.mrb[0].mxu0 %v333
      %v513 = vpop.f32.mrb[0].mxu0
      %v514 = vadd.f32 %v277, %v513
      %v515 = vpop.f32.mrb[0].mxu0
      %v516 = vpop.f32.mrb[0].mxu0
      %v517 = vadd.f32 %v278, %v516
      %v518 = vpop.f32.mrb[0].mxu0
      %519 = vmatprep.mubr.bf16.mxu0 %v336
      %520 = vmatmul.mubr.bf16.gmra.mrb[0].mxu0 %v335
      %v521 = vpop.f32.mrb[0].mxu0
      %v522 = vadd.f32 %v277, %v521
      %v523 = vpop.f32.mrb[0].mxu0
      %v524 = vpop.f32.mrb[0].mxu0
      %v525 = vadd.f32 %v278, %v524
      %v526 = vpop.f32.mrb[0].mxu0
      %527 = vmatprep.mubr.bf16.mxu0 %v338
      %528 = vmatmul.mubr.bf16.gmra.mrb[0].mxu0 %v337
      %v529 = vpop.f32.mrb[0].mxu0
      %v530 = vadd.f32 %v277, %v529
      %v531 = vpop.f32.mrb[0].mxu0
      %v532 = vpop.f32.mrb[0].mxu0
      %v533 = vadd.f32 %v278, %v532
      %v534 = vpop.f32.mrb[0].mxu0
      %535 = vmatprep.mubr.bf16.mxu0 %v340
      %536 = vmatmul.mubr.bf16.gmra.mrb[0].mxu0 %v339
      %v537 = vpop.f32.mrb[0].mxu0
      %v538 = vadd.f32 %v277, %v537
      %v539 = vpop.f32.mrb[0].mxu0
      %v540 = vpop.f32.mrb[0].mxu0
      %v541 = vadd.f32 %v278, %v540
      %v542 = vpop.f32.mrb[0].mxu0
      %543 = vmatprep.mubr.bf16.mxu0 %v342
      %544 = vmatmul.mubr.bf16.gmra.mrb[0].mxu0 %v341
      %v545 = vpop.f32.mrb[0].mxu0
      %v546 = vadd.f32 %v277, %v545
      %v547 = vpop.f32.mrb[0].mxu0
      %v548 = vpop.f32.mrb[0].mxu0
      %v549 = vadd.f32 %v278, %v548
      %v550 = vpop.f32.mrb[0].mxu0
      %551 = vdwg.mxu0
      %v552 = vmax.f32 %v490, %v493
      %v553 = vrot.slane %v552, 4
      %v554 = vmax.f32 %v552, %v553
      %v555 = vrot.slane %v554, 2
      %v556 = vmax.f32 %v554, %v555
      %v557 = vrot.slane %v556, 1
      %v558 = vmax.f32 %v556, %v557
      %v559 = vmax.f32 %v498, %v501
      %v560 = vrot.slane %v559, 4
      %v561 = vmax.f32 %v559, %v560
      %v562 = vrot.slane %v561, 2
      %v563 = vmax.f32 %v561, %v562
      %v564 = vrot.slane %v563, 1
      %v565 = vmax.f32 %v563, %v564
      %v566 = vmax.f32 %v506, %v509
      %v567 = vrot.slane %v566, 4
      %v568 = vmax.f32 %v566, %v567
      %v569 = vrot.slane %v568, 2
      %v570 = vmax.f32 %v568, %v569
      %v571 = vrot.slane %v570, 1
      %v572 = vmax.f32 %v570, %v571
      %v573 = vmax.f32 %v514, %v517
      %v574 = vrot.slane %v573, 4
      %v575 = vmax.f32 %v573, %v574
      %v576 = vrot.slane %v575, 2
      %v577 = vmax.f32 %v575, %v576
      %v578 = vrot.slane %v577, 1
      %v579 = vmax.f32 %v577, %v578
      %v580 = vmax.f32 %v522, %v525
      %v581 = vrot.slane %v580, 4
      %v582 = vmax.f32 %v580, %v581
      %v583 = vrot.slane %v582, 2
      %v584 = vmax.f32 %v582, %v583
      %v585 = vrot.slane %v584, 1
      %v586 = vmax.f32 %v584, %v585
      %v587 = vmax.f32 %v530, %v533
      %v588 = vrot.slane %v587, 4
      %v589 = vmax.f32 %v587, %v588
      %v590 = vrot.slane %v589, 2
      %v591 = vmax.f32 %v589, %v590
      %v592 = vrot.slane %v591, 1
      %v593 = vmax.f32 %v591, %v592
      %v594 = vmax.f32 %v538, %v541
      %v595 = vrot.slane %v594, 4
      %v596 = vmax.f32 %v594, %v595
      %v597 = vrot.slane %v596, 2
      %v598 = vmax.f32 %v596, %v597
      %v599 = vrot.slane %v598, 1
      %v600 = vmax.f32 %v598, %v599
      %v601 = vmax.f32 %v546, %v549
      %v602 = vrot.slane %v601, 4
      %v603 = vmax.f32 %v601, %v602
      %v604 = vrot.slane %v603, 2
      %v605 = vmax.f32 %v603, %v604
      %v606 = vrot.slane %v605, 1
      %v607 = vmax.f32 %v605, %v606
      %v608 = vmax.f32 %v558, 0.0
      %v609 = vmax.f32 %v565, 0.0
      %v610 = vmax.f32 %v572, 0.0
      %v611 = vmax.f32 %v579, 0.0
      %v612 = vmax.f32 %v586, 0.0
      %v613 = vmax.f32 %v593, 0.0
      %v614 = vmax.f32 %v600, 0.0
      %v615 = vmax.f32 %v607, 0.0
      %v616 = vmin.f32 %v608, 6.0
      %v617 = vmin.f32 %v609, 6.0
      %v618 = vmin.f32 %v610, 6.0
      %v619 = vmin.f32 %v611, 6.0
      %v620 = vmin.f32 %v612, 6.0
      %v621 = vmin.f32 %v613, 6.0
      %v622 = vmin.f32 %v614, 6.0
      %v623 = vmin.f32 %v615, 6.0
      %v624 = vpack.c.bf16 %v616, %v616
      %v625 = vpack.c.bf16 %v617, %v617
      %v626 = vpack.c.bf16 %v618, %v618
      %v627 = vpack.c.bf16 %v619, %v619
      %v628 = vpack.c.bf16 %v620, %v620
      %v629 = vpack.c.bf16 %v621, %v621
      %v630 = vpack.c.bf16 %v622, %v622
      %v631 = vpack.c.bf16 %v623, %v623
      %v632 = vld [vmem:[%s3] sm:$0xf]
      %v633 = vld [vmem:[%s3 + $0x4] sm:$0xf]
      %v634 = vld [vmem:[%s3 + $0x8] sm:$0xf]
      %v635 = vld [vmem:[%s3 + $0xc] sm:$0xf]
      %v636 = vld [vmem:[%s3 + $0x10] sm:$0xf]
      %v637 = vld [vmem:[%s3 + $0x14] sm:$0xf]
      %v638 = vld [vmem:[%s3 + $0x18] sm:$0xf]
      %v639 = vld [vmem:[%s3 + $0x1c] sm:$0xf]
      %v640 = vld [vmem:[%s3 + $0x20] sm:$0xf]
      %v641 = vld [vmem:[%s3 + $0x24] sm:$0xf]
      %v642 = vld [vmem:[%s3 + $0x28] sm:$0xf]
      %v643 = vld [vmem:[%s3 + $0x2c] sm:$0xf]
      %v644 = vld [vmem:[%s3 + $0x30] sm:$0xf]
      %v645 = vld [vmem:[%s3 + $0x34] sm:$0xf]
      %v646 = vld [vmem:[%s3 + $0x38] sm:$0xf]
      %v647 = vld [vmem:[%s3 + $0x3c] sm:$0xf]
      %v648 = vld [vmem:[%s4] sm:$0x1]
      %v650 = vlaneseq
      %v651 = vshrl.u32 %v650, 7
      %v652 = vsub.s32 0, %v651
      %v653 = vrot.slane %v648, %v652
      %v663 = vunpack.c.l.b16 %v624
      %v664 = vunpack.c.l.b16 %v625
      %v665 = vunpack.c.l.b16 %v626
      %v666 = vunpack.c.l.b16 %v627
      %v667 = vunpack.c.l.b16 %v628
      %v668 = vunpack.c.l.b16 %v629
      %v669 = vunpack.c.l.b16 %v630
      %v670 = vunpack.c.l.b16 %v631
      %vm671 = vcmask 1041409
      %v672 = vsel %vm671, %v664, %v663
      %vm673 = vcmask 1042434
      %v674 = vsel %vm673, %v665, %v672
      %vm675 = vcmask 1043459
      %v676 = vsel %vm675, %v666, %v674
      %vm677 = vcmask 1044484
      %v678 = vsel %vm677, %v667, %v676
      %vm679 = vcmask 1045509
      %v680 = vsel %vm679, %v668, %v678
      %vm681 = vcmask 1046534
      %v682 = vsel %vm681, %v669, %v680
      %vm683 = vcmask 1047559
      %v684 = vsel %vm683, %v670, %v682
      %v685 = vpack.c.b16 %v684, %v684
      %v703 = vunpack.c.l.b16 %v632
      %v704 = vunpack.c.l.b16 %v633
      %v705 = vunpack.c.l.b16 %v634
      %v706 = vunpack.c.l.b16 %v635
      %v707 = vunpack.c.l.b16 %v636
      %v708 = vunpack.c.l.b16 %v637
      %v709 = vunpack.c.l.b16 %v638
      %v710 = vunpack.c.l.b16 %v639
      %v711 = vunpack.c.l.b16 %v640
      %v712 = vunpack.c.l.b16 %v641
      %v713 = vunpack.c.l.b16 %v642
      %v714 = vunpack.c.l.b16 %v643
      %v715 = vunpack.c.l.b16 %v644
      %v716 = vunpack.c.l.b16 %v645
      %v717 = vunpack.c.l.b16 %v646
      %v718 = vunpack.c.l.b16 %v647
      %v719 = vpack.c.b16 %v704, %v703
      %v720 = vpack.c.b16 %v706, %v705
      %v721 = vpack.c.b16 %v708, %v707
      %v722 = vpack.c.b16 %v710, %v709
      %v723 = vpack.c.b16 %v712, %v711
      %v724 = vpack.c.b16 %v714, %v713
      %v725 = vpack.c.b16 %v716, %v715
      %v726 = vpack.c.b16 %v718, %v717
      %735 = vmatprep.subr.bf16.mxu0 0
      %736 = vmatpush1.bf16.msra.mxu0 %v719
      %737 = vmatprep.subr.bf16.mxu0 0
      %738 = vmatpush1.bf16.msra.mxu0 %v720
      %739 = vmatprep.subr.bf16.mxu0 0
      %740 = vmatpush1.bf16.msra.mxu0 %v721
      %741 = vmatprep.subr.bf16.mxu0 0
      %742 = vmatpush1.bf16.msra.mxu0 %v722
      %743 = vmatprep.subr.bf16.mxu0 0
      %744 = vmatpush1.bf16.msra.mxu0 %v723
      %745 = vmatprep.subr.bf16.mxu0 0
      %746 = vmatpush1.bf16.msra.mxu0 %v724
      %747 = vmatprep.subr.bf16.mxu0 0
      %748 = vmatpush1.bf16.msra.mxu0 %v725
      %749 = vmatprep.subr.bf16.mxu0 0
      %750 = vmatpush1.bf16.msra.mxu0 %v726
      %751 = vmatprep.subr.bf16.mxu0 0
      %752 = vmatpush1.bf16.msra.mxu0 0
      %753 = vmatprep.subr.bf16.mxu0 0
      %754 = vmatpush1.bf16.msra.mxu0 0
      %755 = vmatprep.subr.bf16.mxu0 0
      %756 = vmatpush1.bf16.msra.mxu0 0
      %757 = vmatprep.subr.bf16.mxu0 0
      %758 = vmatpush1.bf16.msra.mxu0 0
      %759 = vmatprep.subr.bf16.mxu0 0
      %760 = vmatpush1.bf16.msra.mxu0 0
      %761 = vmatprep.subr.bf16.mxu0 0
      %762 = vmatpush1.bf16.msra.mxu0 0
      %763 = vmatprep.subr.bf16.mxu0 0
      %764 = vmatpush1.bf16.msra.mxu0 0
      %765 = vmatprep.subr.bf16.mxu0 0
      %766 = vmatpush1.bf16.msra.mxu0 0
      %767 = vmatprep.mubr.bf16.mxu0 0
      %768 = vmatmul.mubr.bf16.gmra.mrb[0].mxu0 %v685
      %v769 = vpop.f32.mrb[0].mxu0
      %v770 = vadd.f32 %v653, %v769
      %v771 = vpop.f32.mrb[0].mxu0
      %v772 = vpop.f32.mrb[0].mxu0
      %v773 = vpop.f32.mrb[0].mxu0
      %774 = vdwg.mxu0
      %775 = vst [vmem:[%s227] sm:$0xff] %v770
      %p776 = scmp.lt.s32.totalorder %s16, 1
      %s777 = scalar_select %p776, %s16, 1
      %s778 = smul.addr %s777, 8
      %s779 = scalar_lea.vmem %s5, %s778
      // Predicated region
      $region41: #{cnn_forward.1} parent=39 // pred_check
        %p780 = pneg %p144
      $region42: #{cnn_forward.1} parent=39 // pred_check_branch
        %782 = sbr.rel (%p780) target = $region44
      $region43: #{cnn_forward.1} parent=39 // pred_region
        _
      $region44: #{cnn_forward.1} parent=39 // pred_fallthru
        _
    $region40: #{cnn_forward.1} parent=5 // pred_fallthru
      _
    %p783 = scmp.le.s32.totalorder 2, %s11
    // Predicated region
    $region45: #{cnn_forward.1} parent=5 // pred_check
      %p784 = pneg %p783
    $region46: #{cnn_forward.1} parent=5 // pred_check_branch
      %786 = sbr.rel (%p784) target = $region48
    $region47: #{cnn_forward.1} parent=5 // pred_region
      %s787 = ssub.s32 %s11, 2
      // Predicated region
      $region49: #{cnn_forward.1} parent=47 // pred_check
        %p788 = pneg %p150
      $region50: #{cnn_forward.1} parent=47 // pred_check_branch
        %790 = sbr.rel (%p788) target = $region52
      $region51: #{cnn_forward.1} parent=47 // pred_region
        %p791 = scmp.lt.s32.totalorder %s17, 1
        %s792 = scalar_select %p791, %s17, 1
        %s793 = smul.addr %s792, 8
        %s794 = scalar_lea.vmem %s5, %s793
      $region52: #{cnn_forward.1} parent=47 // pred_fallthru
        _
    $region48: #{cnn_forward.1} parent=5 // pred_fallthru
      _
  $region6: #{cnn_forward.1} parent=0 // loop_footer
    %s15 = sadd.s32 1, %s11
  $region7: #{cnn_forward.1} parent=0 // loop_footer_branch
    %10 = sbr.rel target = $region3
  $region8: #{cnn_forward.1} parent=0 // loop_exit
    _

</llo_original>
